<compile_context>
chip_gen: v7x
topology: tpu7x:2x2x1
jax: 0.10.0
libtpu: 0.0.40
codegen_flags: <defaults>
</compile_context>

<pallas_src>
import functools

import jax
import jax.numpy as jnp
import numpy as np
from jax import lax
from jax.experimental import pallas as pl
from jax.experimental.pallas import tpu as pltpu


class Config:
    temperature = 0.5
    margin = 0.2
    negatives_per_positive = 4


def _ontology_contrastive_kernel(text_ref, kgt_ref, onto_ref, out_ref,
                                 pos_ref, cnt_ref, topk_ref,
                                 *, temperature, margin, k, tm, tn):
    i = pl.program_id(0)
    j = pl.program_id(1)
    neg_inf = jnp.float32(-jnp.inf)

    @pl.when(jnp.logical_and(i == 0, j == 0))
    def _init():
        pos_ref[...] = jnp.zeros_like(pos_ref)
        cnt_ref[...] = jnp.zeros_like(cnt_ref)
        topk_ref[...] = jnp.full_like(topk_ref, neg_inf)

    # (tm, D) @ (D, tn) -> (tm, tn) f32 on the MXU. kg was transposed once in
    # the wrapper, so no per-step relayout of the kg block is needed.
    sim = lax.dot_general(text_ref[...], kgt_ref[...],
                          dimension_numbers=(((1,), (0,)), ((), ())),
                          preferred_element_type=jnp.float32)

    onto = onto_ref[...]
    pos_mask = onto > 0.7
    neg_mask = onto < 0.3

    # Positive term: -log(exp(x)) == -x, so only a masked sum + count is
    # needed. Accumulate elementwise (VPU adds only); reduce once at finalize.
    pos_ref[...] += jnp.where(pos_mask, sim, 0.0)
    cnt_ref[...] += pos_mask.astype(jnp.float32)

    # Negative term: per-(row, lane) running top-k kept in VMEM, merged with a
    # k-step compare/select insertion (VPU only, no cross-lane work per step).
    # The multiset of the k globally-largest masked sims is always contained
    # in this slab, so the finalize extraction below is exact.
    v = jnp.where(neg_mask, sim, neg_inf)
    for s in range(k):
        sl = pl.ds(s * tm, tm)
        cur = topk_ref[sl, :]
        keep = cur >= v
        topk_ref[sl, :] = jnp.where(keep, cur, v)
        v = jnp.where(keep, v, cur)

    @pl.when(jnp.logical_and(i == pl.num_programs(0) - 1,
                             j == pl.num_programs(1) - 1))
    def _finalize():
        inv_t = jnp.float32(1.0 / temperature)
        pos_sum = jnp.sum(pos_ref[...])
        pos_cnt = jnp.sum(cnt_ref[...])
        # NOTE: divides by zero (NaN) if no ontology entry is > 0.7 — exactly
        # like the PyTorch reference (mean over an empty selection).
        pos_loss = -(pos_sum * inv_t) / pos_cnt

        # Exact top-k (torch.topk multiset semantics) over the candidate slab.
        cand = topk_ref[...]                               # (k*tm, tn)
        rows = lax.broadcasted_iota(jnp.int32, cand.shape, 0)
        cols = lax.broadcasted_iota(jnp.int32, cand.shape, 1)
        fid = rows * tn + cols                             # unique id per entry
        sentinel = jnp.int32(k * tm * tn)

        lane = lax.broadcasted_iota(jnp.int32, (1, 128), 1)
        tv = jnp.full((1, 128), neg_inf, dtype=jnp.float32)
        for s in range(k):
            m = jnp.max(cand)
            # Remove exactly ONE occurrence so duplicated values keep
            # torch.topk multiset semantics.
            sel = jnp.min(jnp.where(cand == m, fid, sentinel))
            cand = jnp.where(fid == sel, neg_inf, cand)
            tv = jnp.where(lane == s, m, tv)

        # -log(1 - exp(x)) == -log1p(-exp(x)); NaN/inf if any selected
        # sim/temperature >= 0, exactly like the reference. The k
        # transcendentals are vectorized into one vreg row.
        e = jnp.exp(tv * inv_t)
        terms = -jnp.log1p(-e)
        # If fewer than k masked negatives exist, spare slots hold -inf ->
        # exp()==0 -> term 0, while the mean still divides by k (torch.topk
        # would raise in that edge case).
        neg_loss = jnp.sum(jnp.where(lane < k, terms, 0.0)) / float(k)

        loss = pos_loss + neg_loss + jnp.float32(margin)
        out_ref[...] = jnp.reshape(jnp.maximum(loss, 0.0), (1, 1))


def _round_up(x, m):
    return ((x + m - 1) // m) * m


def ontology_contrastive_loss(text_emb, kg_emb, ontology_matrix, config, *,
                              row_tile=256, col_tile=256,
                              matmul_dtype=jnp.bfloat16):
    """Pallas TPU implementation of OntologyContrastiveLoss.forward."""
    B, D = text_emb.shape
    assert kg_emb.shape == (B, D)
    assert ontology_matrix.shape == (B, B)
    assert row_tile % 8 == 0 and col_tile % 128 == 0
    temperature = float(config.temperature)
    margin = float(config.margin)
    k = int(config.negatives_per_positive)
    assert temperature > 0.0, "top-k-before-scaling requires temperature > 0"

    # bf16 MXU inputs by default (f32 accumulation in-kernel). Pass
    # matmul_dtype=jnp.float32 for bit-faithful similarities.
    mm_dtype = matmul_dtype if matmul_dtype is not None else text_emb.dtype
    text = text_emb.astype(mm_dtype)
    # One-time transpose outside the grid so the kernel contracts
    # (tm, D) @ (D, tn) with no per-step relayout of kg.
    kgt = kg_emb.astype(mm_dtype).T                        # (D, B)
    onto = ontology_matrix
    # TODO(synk): optionally stream a packed int8 pos/neg mask instead of the
    # f32 ontology matrix (quarters the kernel's dominant HBM stream at large
    # B, at the cost of an extra XLA pass over onto).

    tm = B if B <= row_tile else row_tile
    tn = B if B <= col_tile else col_tile
    bp_rows = _round_up(B, tm)
    bp_cols = _round_up(B, tn)
    if bp_rows != B:
        text = jnp.pad(text, ((0, bp_rows - B), (0, 0)))
    if bp_cols != B:
        kgt = jnp.pad(kgt, ((0, 0), (0, bp_cols - B)))
    if bp_rows != B or bp_cols != B:
        # Pad ontology with 0.5: neither > 0.7 nor < 0.3, so padded rows/cols
        # contribute to neither term and no validity mask is needed in-kernel.
        onto = jnp.pad(onto, ((0, bp_rows - B), (0, bp_cols - B)),
                       constant_values=0.5)

    grid = (bp_rows // tm, bp_cols // tn)

    kernel = functools.partial(
        _ontology_contrastive_kernel,
        temperature=temperature, margin=margin, k=k, tm=tm, tn=tn)

    out = pl.pallas_call(
        kernel,
        out_shape=jax.ShapeDtypeStruct((1, 1), jnp.float32),
        grid_spec=pltpu.PrefetchScalarGridSpec(
            num_scalar_prefetch=0,
            grid=grid,
            in_specs=[
                pl.BlockSpec((tm, D), lambda i, j: (i, 0)),    # text row tile
                pl.BlockSpec((D, tn), lambda i, j: (0, j)),    # kg.T column tile
                pl.BlockSpec((tm, tn), lambda i, j: (i, j)),   # ontology tile
            ],
            out_specs=pl.BlockSpec((1, 1), lambda i, j: (0, 0)),
            scratch_shapes=[
                pltpu.VMEM((tm, tn), jnp.float32),       # masked positive sums
                pltpu.VMEM((tm, tn), jnp.float32),       # positive counts
                pltpu.VMEM((k * tm, tn), jnp.float32),   # running per-position top-k
            ],
        ),
        # Both grid axes carry running accumulators -> sequential.
        # TODO(synk): emit per-row-tile partials + a wrapper merge to use both
        # v7x TensorCores; optional fp8 matmul path on v7x; re-check whether
        # the onto DMA is exposed and, if so, use pipeline_mode=pl.Buffered(3).
        compiler_params=pltpu.CompilerParams(
            dimension_semantics=("arbitrary", "arbitrary")),
    )(text, kgt, onto)
    return out[0, 0]


def _reference_loss_numpy(text, kg, onto, config):
    sim = text.astype(np.float32) @ kg.astype(np.float32).T / config.temperature
    pos = sim[onto > 0.7]
    neg = sim[onto < 0.3]
    topk = np.sort(neg)[::-1][: config.negatives_per_positive]
    pos_loss = (-np.log(np.exp(pos))).mean()
    neg_loss = (-np.log(1.0 - np.exp(topk))).mean()
    return max(pos_loss + neg_loss + config.margin, 0.0)


if __name__ == "__main__":
    config = Config()
    key = jax.random.PRNGKey(0)

    ok = True
    # (8, 32): single-block path.  (300, 64): padded + (2, 2)-tiled path.
    for B, D in [(8, 32), (300, 64)]:
        k1, k2, k3 = jax.random.split(jax.random.fold_in(key, B), 3)
        # Embeddings chosen so all similarities are negative -> finite loss
        # (exp(sim) < 1 for every selected negative).
        text_emb = jax.random.uniform(k1, (B, D), jnp.float32, minval=0.1, maxval=1.0)
        kg_emb = -jax.random.uniform(k2, (B, D), jnp.float32, minval=0.1, maxval=1.0)
        off = jax.random.uniform(k3, (B, B), jnp.float32, minval=0.0, maxval=0.29)
        ontology = jnp.where(jnp.eye(B, dtype=bool), jnp.float32(0.95), off)

        # Exact f32 path vs f32 reference.
        loss32 = ontology_contrastive_loss(text_emb, kg_emb, ontology, config,
                                           matmul_dtype=jnp.float32)
        loss32 = float(jax.block_until_ready(loss32))
        ref32 = _reference_loss_numpy(np.asarray(text_emb), np.asarray(kg_emb),
                                      np.asarray(ontology), config)
        ok &= bool(np.allclose(loss32, ref32, rtol=1e-4, atol=1e-4))

        # Default bf16-MXU path vs reference on the bf16-rounded inputs.
        loss16 = ontology_contrastive_loss(text_emb, kg_emb, ontology, config)
        loss16 = float(jax.block_until_ready(loss16))
        ref16 = _reference_loss_numpy(
            np.asarray(text_emb.astype(jnp.bfloat16).astype(jnp.float32)),
            np.asarray(kg_emb.astype(jnp.bfloat16).astype(jnp.float32)),
            np.asarray(ontology), config)
        ok &= bool(np.allclose(loss16, ref16, rtol=1e-3, atol=1e-3))

    assert ok
    print("KERNEL_OK")
</pallas_src>

<mosaic_0001>
module attributes {stable_mosaic.version = 11 : i64} {
  func.func @_ontology_contrastive_kernel(%arg0: i32, %arg1: i32, %arg2: memref<8x32xf32, #tpu.memory_space<vmem>>, %arg3: memref<32x8xf32, #tpu.memory_space<vmem>>, %arg4: memref<8x8xf32, #tpu.memory_space<vmem>>, %arg5: memref<1x1xf32, #tpu.memory_space<vmem>>, %arg6: memref<8x8xf32, #tpu.memory_space<vmem>>, %arg7: memref<8x8xf32, #tpu.memory_space<vmem>>, %arg8: memref<32x8xf32, #tpu.memory_space<vmem>>) attributes {dimension_semantics = [#tpu.dimension_semantics<arbitrary>, #tpu.dimension_semantics<arbitrary>], iteration_bounds = array<i64: 1, 1>, scalar_prefetch = 0 : i64, scratch_operands = 3 : i64, tpu.core_type = #tpu.core_type<tc>, window_params = [{transform_indices = @transform_0, window_bounds = array<i64: 8, 32>}, {transform_indices = @transform_1, window_bounds = array<i64: 32, 8>}, {transform_indices = @transform_2, window_bounds = array<i64: 8, 8>}, {pipeline_mode = #tpu.pipeline_mode<synchronous>, transform_indices = @transform_3, window_bounds = array<i64: 1, 1>}]} {
    %c0_i32 = arith.constant 0 : i32
    %0 = arith.cmpi eq, %arg0, %c0_i32 : i32
    %c0_i32_0 = arith.constant 0 : i32
    %1 = arith.cmpi eq, %arg1, %c0_i32_0 : i32
    %2 = arith.andi %0, %1 : i1
    %3 = arith.extui %2 : i1 to i32
    %cst = arith.constant 0xFF800000 : f32
    %c0_i32_1 = arith.constant 0 : i32
    %4 = arith.cmpi ne, %3, %c0_i32_1 : i32
    scf.if %4 {
      %cst_37 = arith.constant 0.000000e+00 : f32
      %49 = vector.broadcast %cst_37 : f32 to vector<8x8xf32>
      %c0_38 = arith.constant 0 : index
      %c0_39 = arith.constant 0 : index
      %50 = vector.load %arg6[%c0_38, %c0_39] : memref<8x8xf32, #tpu.memory_space<vmem>>, vector<8x8xf32>
      tpu.vector_store %arg6[%c0_38, %c0_39], %49 {strides = array<i32>} : memref<8x8xf32, #tpu.memory_space<vmem>>, vector<8x8xf32>,
      %cst_40 = arith.constant 0.000000e+00 : f32
      %51 = vector.broadcast %cst_40 : f32 to vector<8x8xf32>
      %c0_41 = arith.constant 0 : index
      %c0_42 = arith.constant 0 : index
      %52 = vector.load %arg7[%c0_41, %c0_42] : memref<8x8xf32, #tpu.memory_space<vmem>>, vector<8x8xf32>
      tpu.vector_store %arg7[%c0_41, %c0_42], %51 {strides = array<i32>} : memref<8x8xf32, #tpu.memory_space<vmem>>, vector<8x8xf32>,
      %53 = vector.broadcast %cst : f32 to vector<32x8xf32>
      %c0_43 = arith.constant 0 : index
      %c0_44 = arith.constant 0 : index
      %54 = vector.load %arg8[%c0_43, %c0_44] : memref<32x8xf32, #tpu.memory_space<vmem>>, vector<32x8xf32>
      tpu.vector_store %arg8[%c0_43, %c0_44], %53 {strides = array<i32>} : memref<32x8xf32, #tpu.memory_space<vmem>>, vector<32x8xf32>,
    } else {
    }
    %c0 = arith.constant 0 : index
    %c0_2 = arith.constant 0 : index
    %5 = vector.load %arg2[%c0, %c0_2] : memref<8x32xf32, #tpu.memory_space<vmem>>, vector<8x32xf32>
    %c0_3 = arith.constant 0 : index
    %c0_4 = arith.constant 0 : index
    %6 = vector.load %arg3[%c0_3, %c0_4] : memref<32x8xf32, #tpu.memory_space<vmem>>, vector<32x8xf32>
    %cst_5 = arith.constant dense<0.000000e+00> : vector<8x8xf32>
    %7 = tpu.matmul %5, %6, %cst_5 {dimension_numbers = #tpu.dot_dimension_numbers<[1], [0], [0], [1], [0, 0, 1, 1], [], []>} : vector<8x32xf32>, vector<32x8xf32>, vector<8x8xf32> -> vector<8x8xf32>
    %c0_6 = arith.constant 0 : index
    %c0_7 = arith.constant 0 : index
    %8 = vector.load %arg4[%c0_6, %c0_7] : memref<8x8xf32, #tpu.memory_space<vmem>>, vector<8x8xf32>
    %cst_8 = arith.constant 0.699999988 : f32
    %9 = vector.broadcast %cst_8 : f32 to vector<8x8xf32>
    %10 = arith.cmpf ogt, %8, %9 : vector<8x8xf32>
    %cst_9 = arith.constant 3.000000e-01 : f32
    %11 = vector.broadcast %cst_9 : f32 to vector<8x8xf32>
    %12 = arith.cmpf olt, %8, %11 : vector<8x8xf32>
    %c0_10 = arith.constant 0 : index
    %c0_11 = arith.constant 0 : index
    %13 = vector.load %arg6[%c0_10, %c0_11] : memref<8x8xf32, #tpu.memory_space<vmem>>, vector<8x8xf32>
    %cst_12 = arith.constant 0.000000e+00 : f32
    %14 = vector.broadcast %cst_12 : f32 to vector<8x8xf32>
    %15 = arith.select %10, %7, %14 : vector<8x8xi1>, vector<8x8xf32>
    %16 = arith.addf %13, %15 : vector<8x8xf32>
    %c0_13 = arith.constant 0 : index
    %c0_14 = arith.constant 0 : index
    %17 = vector.load %arg6[%c0_13, %c0_14] : memref<8x8xf32, #tpu.memory_space<vmem>>, vector<8x8xf32>
    tpu.vector_store %arg6[%c0_13, %c0_14], %16 {strides = array<i32>} : memref<8x8xf32, #tpu.memory_space<vmem>>, vector<8x8xf32>,
    %c0_15 = arith.constant 0 : index
    %c0_16 = arith.constant 0 : index
    %18 = vector.load %arg7[%c0_15, %c0_16] : memref<8x8xf32, #tpu.memory_space<vmem>>, vector<8x8xf32>
    %19 = arith.extui %10 : vector<8x8xi1> to vector<8x8xi32>
    %20 = arith.sitofp %19 : vector<8x8xi32> to vector<8x8xf32>
    %21 = arith.addf %18, %20 : vector<8x8xf32>
    %c0_17 = arith.constant 0 : index
    %c0_18 = arith.constant 0 : index
    %22 = vector.load %arg7[%c0_17, %c0_18] : memref<8x8xf32, #tpu.memory_space<vmem>>, vector<8x8xf32>
    tpu.vector_store %arg7[%c0_17, %c0_18], %21 {strides = array<i32>} : memref<8x8xf32, #tpu.memory_space<vmem>>, vector<8x8xf32>,
    %cst_19 = arith.constant 0xFF800000 : f32
    %23 = vector.broadcast %cst_19 : f32 to vector<8x8xf32>
    %24 = arith.select %12, %7, %23 : vector<8x8xi1>, vector<8x8xf32>
    %c0_20 = arith.constant 0 : index
    %c0_21 = arith.constant 0 : index
    %25 = vector.load %arg8[%c0_20, %c0_21] : memref<32x8xf32, #tpu.memory_space<vmem>>, vector<8x8xf32>
    %26 = arith.cmpf oge, %25, %24 : vector<8x8xf32>
    %27 = arith.select %26, %25, %24 : vector<8x8xi1>, vector<8x8xf32>
    %c0_22 = arith.constant 0 : index
    %c0_23 = arith.constant 0 : index
    %28 = vector.load %arg8[%c0_22, %c0_23] : memref<32x8xf32, #tpu.memory_space<vmem>>, vector<8x8xf32>
    tpu.vector_store %arg8[%c0_22, %c0_23], %27 {strides = array<i32>} : memref<32x8xf32, #tpu.memory_space<vmem>>, vector<8x8xf32>,
    %29 = arith.select %26, %24, %25 : vector<8x8xi1>, vector<8x8xf32>
    %c8 = arith.constant 8 : index
    %c0_24 = arith.constant 0 : index
    %30 = vector.load %arg8[%c8, %c0_24] : memref<32x8xf32, #tpu.memory_space<vmem>>, vector<8x8xf32>
    %31 = arith.cmpf oge, %30, %29 : vector<8x8xf32>
    %32 = arith.select %31, %30, %29 : vector<8x8xi1>, vector<8x8xf32>
    %c8_25 = arith.constant 8 : index
    %c0_26 = arith.constant 0 : index
    %33 = vector.load %arg8[%c8_25, %c0_26] : memref<32x8xf32, #tpu.memory_space<vmem>>, vector<8x8xf32>
    tpu.vector_store %arg8[%c8_25, %c0_26], %32 {strides = array<i32>} : memref<32x8xf32, #tpu.memory_space<vmem>>, vector<8x8xf32>,
    %34 = arith.select %31, %29, %30 : vector<8x8xi1>, vector<8x8xf32>
    %c16 = arith.constant 16 : index
    %c0_27 = arith.constant 0 : index
    %35 = vector.load %arg8[%c16, %c0_27] : memref<32x8xf32, #tpu.memory_space<vmem>>, vector<8x8xf32>
    %36 = arith.cmpf oge, %35, %34 : vector<8x8xf32>
    %37 = arith.select %36, %35, %34 : vector<8x8xi1>, vector<8x8xf32>
    %c16_28 = arith.constant 16 : index
    %c0_29 = arith.constant 0 : index
    %38 = vector.load %arg8[%c16_28, %c0_29] : memref<32x8xf32, #tpu.memory_space<vmem>>, vector<8x8xf32>
    tpu.vector_store %arg8[%c16_28, %c0_29], %37 {strides = array<i32>} : memref<32x8xf32, #tpu.memory_space<vmem>>, vector<8x8xf32>,
    %39 = arith.select %36, %34, %35 : vector<8x8xi1>, vector<8x8xf32>
    %c24 = arith.constant 24 : index
    %c0_30 = arith.constant 0 : index
    %40 = vector.load %arg8[%c24, %c0_30] : memref<32x8xf32, #tpu.memory_space<vmem>>, vector<8x8xf32>
    %41 = arith.cmpf oge, %40, %39 : vector<8x8xf32>
    %42 = arith.select %41, %40, %39 : vector<8x8xi1>, vector<8x8xf32>
    %c24_31 = arith.constant 24 : index
    %c0_32 = arith.constant 0 : index
    %43 = vector.load %arg8[%c24_31, %c0_32] : memref<32x8xf32, #tpu.memory_space<vmem>>, vector<8x8xf32>
    tpu.vector_store %arg8[%c24_31, %c0_32], %42 {strides = array<i32>} : memref<32x8xf32, #tpu.memory_space<vmem>>, vector<8x8xf32>,
    %c0_i32_33 = arith.constant 0 : i32
    %44 = arith.cmpi eq, %arg0, %c0_i32_33 : i32
    %c0_i32_34 = arith.constant 0 : i32
    %45 = arith.cmpi eq, %arg1, %c0_i32_34 : i32
    %46 = arith.andi %44, %45 : i1
    %47 = arith.extui %46 : i1 to i32
    %cst_35 = arith.constant 0xFF800000 : f32
    %c0_i32_36 = arith.constant 0 : i32
    %48 = arith.cmpi ne, %47, %c0_i32_36 : i32
    scf.if %48 {
      %c0_37 = arith.constant 0 : index
      %c0_38 = arith.constant 0 : index
      %49 = vector.load %arg6[%c0_37, %c0_38] : memref<8x8xf32, #tpu.memory_space<vmem>>, vector<8x8xf32>
      %50 = vector.shape_cast %49 : vector<8x8xf32> to vector<1x8x8xf32>
      %cst_39 = arith.constant dense<0.000000e+00> : vector<1xf32>
      %51 = vector.multi_reduction <add>, %50, %cst_39 [1, 2] : vector<1x8x8xf32> to vector<1xf32>
      %52 = vector.shape_cast %51 : vector<1xf32> to vector<1x1x1xf32>
      %53 = vector.extract %52[0, 0, 0] : f32 from vector<1x1x1xf32>
      %c0_40 = arith.constant 0 : index
      %c0_41 = arith.constant 0 : index
      %54 = vector.load %arg7[%c0_40, %c0_41] : memref<8x8xf32, #tpu.memory_space<vmem>>, vector<8x8xf32>
      %55 = vector.shape_cast %54 : vector<8x8xf32> to vector<1x8x8xf32>
      %cst_42 = arith.constant dense<0.000000e+00> : vector<1xf32>
      %56 = vector.multi_reduction <add>, %55, %cst_42 [1, 2] : vector<1x8x8xf32> to vector<1xf32>
      %57 = vector.shape_cast %56 : vector<1xf32> to vector<1x1x1xf32>
      %58 = vector.extract %57[0, 0, 0] : f32 from vector<1x1x1xf32>
      %cst_43 = arith.constant 2.000000e+00 : f32
      %59 = arith.mulf %53, %cst_43 : f32
      %cst_44 = arith.constant 0.000000e+00 : f32
      %60 = arith.subf %cst_44, %59 : f32
      %61 = arith.divf %60, %58 : f32
      %c0_45 = arith.constant 0 : index
      %c0_46 = arith.constant 0 : index
      %62 = vector.load %arg8[%c0_45, %c0_46] : memref<32x8xf32, #tpu.memory_space<vmem>>, vector<32x8xf32>
      %63 = tpu.iota {dimensions = array<i32: 0>} : vector<32x8xi32>
      %64 = tpu.iota {dimensions = array<i32: 1>} : vector<32x8xi32>
      %c8_i32 = arith.constant 8 : i32
      %65 = vector.broadcast %c8_i32 : i32 to vector<32x8xi32>
      %66 = arith.muli %63, %65 : vector<32x8xi32>
      %67 = arith.addi %66, %64 : vector<32x8xi32>
      %68 = tpu.iota {dimensions = array<i32: 1>} : vector<1x128xi32>
      %69 = vector.broadcast %cst_35 : f32 to vector<1x128xf32>
      %70 = vector.shape_cast %62 : vector<32x8xf32> to vector<1x32x8xf32>
      %cst_47 = arith.constant dense<0xFF800000> : vector<1xf32>
      %71 = vector.multi_reduction <maximumf>, %70, %cst_47 [1, 2] : vector<1x32x8xf32> to vector<1xf32>
      %72 = vector.shape_cast %71 : vector<1xf32> to vector<1x1x1xf32>
      %73 = vector.extract %72[0, 0, 0] : f32 from vector<1x1x1xf32>
      %74 = vector.broadcast %73 : f32 to vector<32x8xf32>
      %75 = arith.cmpf oeq, %62, %74 : vector<32x8xf32>
      %c256_i32 = arith.constant 256 : i32
      %76 = vector.broadcast %c256_i32 : i32 to vector<32x8xi32>
      %77 = arith.select %75, %67, %76 : vector<32x8xi1>, vector<32x8xi32>
      %78 = vector.shape_cast %77 : vector<32x8xi32> to vector<1x32x8xi32>
      %cst_48 = arith.constant dense<2147483647> : vector<1xi32>
      %79 = vector.multi_reduction <minsi>, %78, %cst_48 [1, 2] : vector<1x32x8xi32> to vector<1xi32>
      %80 = vector.shape_cast %79 : vector<1xi32> to vector<1x1x1xi32>
      %81 = vector.extract %80[0, 0, 0] : i32 from vector<1x1x1xi32>
      %82 = vector.broadcast %81 : i32 to vector<32x8xi32>
      %83 = arith.cmpi eq, %67, %82 : vector<32x8xi32>
      %84 = vector.broadcast %cst_35 : f32 to vector<32x8xf32>
      %85 = arith.select %83, %84, %62 : vector<32x8xi1>, vector<32x8xf32>
      %c0_i32_49 = arith.constant 0 : i32
      %86 = vector.broadcast %c0_i32_49 : i32 to vector<1x128xi32>
      %87 = arith.cmpi eq, %68, %86 : vector<1x128xi32>
      %88 = vector.broadcast %73 : f32 to vector<1x128xf32>
      %89 = arith.select %87, %88, %69 : vector<1x128xi1>, vector<1x128xf32>
      %90 = vector.shape_cast %85 : vector<32x8xf32> to vector<1x32x8xf32>
      %cst_50 = arith.constant dense<0xFF800000> : vector<1xf32>
      %91 = vector.multi_reduction <maximumf>, %90, %cst_50 [1, 2] : vector<1x32x8xf32> to vector<1xf32>
      %92 = vector.shape_cast %91 : vector<1xf32> to vector<1x1x1xf32>
      %93 = vector.extract %92[0, 0, 0] : f32 from vector<1x1x1xf32>
      %94 = vector.broadcast %93 : f32 to vector<32x8xf32>
      %95 = arith.cmpf oeq, %85, %94 : vector<32x8xf32>
      %c256_i32_51 = arith.constant 256 : i32
      %96 = vector.broadcast %c256_i32_51 : i32 to vector<32x8xi32>
      %97 = arith.select %95, %67, %96 : vector<32x8xi1>, vector<32x8xi32>
      %98 = vector.shape_cast %97 : vector<32x8xi32> to vector<1x32x8xi32>
      %cst_52 = arith.constant dense<2147483647> : vector<1xi32>
      %99 = vector.multi_reduction <minsi>, %98, %cst_52 [1, 2] : vector<1x32x8xi32> to vector<1xi32>
      %100 = vector.shape_cast %99 : vector<1xi32> to vector<1x1x1xi32>
      %101 = vector.extract %100[0, 0, 0] : i32 from vector<1x1x1xi32>
      %102 = vector.broadcast %101 : i32 to vector<32x8xi32>
      %103 = arith.cmpi eq, %67, %102 : vector<32x8xi32>
      %104 = vector.broadcast %cst_35 : f32 to vector<32x8xf32>
      %105 = arith.select %103, %104, %85 : vector<32x8xi1>, vector<32x8xf32>
      %c1_i32 = arith.constant 1 : i32
      %106 = vector.broadcast %c1_i32 : i32 to vector<1x128xi32>
      %107 = arith.cmpi eq, %68, %106 : vector<1x128xi32>
      %108 = vector.broadcast %93 : f32 to vector<1x128xf32>
      %109 = arith.select %107, %108, %89 : vector<1x128xi1>, vector<1x128xf32>
      %110 = vector.shape_cast %105 : vector<32x8xf32> to vector<1x32x8xf32>
      %cst_53 = arith.constant dense<0xFF800000> : vector<1xf32>
      %111 = vector.multi_reduction <maximumf>, %110, %cst_53 [1, 2] : vector<1x32x8xf32> to vector<1xf32>
      %112 = vector.shape_cast %111 : vector<1xf32> to vector<1x1x1xf32>
      %113 = vector.extract %112[0, 0, 0] : f32 from vector<1x1x1xf32>
      %114 = vector.broadcast %113 : f32 to vector<32x8xf32>
      %115 = arith.cmpf oeq, %105, %114 : vector<32x8xf32>
      %c256_i32_54 = arith.constant 256 : i32
      %116 = vector.broadcast %c256_i32_54 : i32 to vector<32x8xi32>
      %117 = arith.select %115, %67, %116 : vector<32x8xi1>, vector<32x8xi32>
      %118 = vector.shape_cast %117 : vector<32x8xi32> to vector<1x32x8xi32>
      %cst_55 = arith.constant dense<2147483647> : vector<1xi32>
      %119 = vector.multi_reduction <minsi>, %118, %cst_55 [1, 2] : vector<1x32x8xi32> to vector<1xi32>
      %120 = vector.shape_cast %119 : vector<1xi32> to vector<1x1x1xi32>
      %121 = vector.extract %120[0, 0, 0] : i32 from vector<1x1x1xi32>
      %122 = vector.broadcast %121 : i32 to vector<32x8xi32>
      %123 = arith.cmpi eq, %67, %122 : vector<32x8xi32>
      %124 = vector.broadcast %cst_35 : f32 to vector<32x8xf32>
      %125 = arith.select %123, %124, %105 : vector<32x8xi1>, vector<32x8xf32>
      %c2_i32 = arith.constant 2 : i32
      %126 = vector.broadcast %c2_i32 : i32 to vector<1x128xi32>
      %127 = arith.cmpi eq, %68, %126 : vector<1x128xi32>
      %128 = vector.broadcast %113 : f32 to vector<1x128xf32>
      %129 = arith.select %127, %128, %109 : vector<1x128xi1>, vector<1x128xf32>
      %130 = vector.shape_cast %125 : vector<32x8xf32> to vector<1x32x8xf32>
      %cst_56 = arith.constant dense<0xFF800000> : vector<1xf32>
      %131 = vector.multi_reduction <maximumf>, %130, %cst_56 [1, 2] : vector<1x32x8xf32> to vector<1xf32>
      %132 = vector.shape_cast %131 : vector<1xf32> to vector<1x1x1xf32>
      %133 = vector.extract %132[0, 0, 0] : f32 from vector<1x1x1xf32>
      %c3_i32 = arith.constant 3 : i32
      %134 = vector.broadcast %c3_i32 : i32 to vector<1x128xi32>
      %135 = arith.cmpi eq, %68, %134 : vector<1x128xi32>
      %136 = vector.broadcast %133 : f32 to vector<1x128xf32>
      %137 = arith.select %135, %136, %129 : vector<1x128xi1>, vector<1x128xf32>
      %cst_57 = arith.constant 2.000000e+00 : f32
      %138 = vector.broadcast %cst_57 : f32 to vector<1x128xf32>
      %139 = arith.mulf %137, %138 : vector<1x128xf32>
      %140 = math.exp %139 : vector<1x128xf32>
      %cst_58 = arith.constant 0.000000e+00 : f32
      %141 = vector.broadcast %cst_58 : f32 to vector<1x128xf32>
      %142 = arith.subf %141, %140 : vector<1x128xf32>
      %143 = math.log1p %142 : vector<1x128xf32>
      %cst_59 = arith.constant 0.000000e+00 : f32
      %144 = vector.broadcast %cst_59 : f32 to vector<1x128xf32>
      %145 = arith.subf %144, %143 : vector<1x128xf32>
      %c4_i32 = arith.constant 4 : i32
      %146 = vector.broadcast %c4_i32 : i32 to vector<1x128xi32>
      %147 = arith.cmpi slt, %68, %146 : vector<1x128xi32>
      %cst_60 = arith.constant 0.000000e+00 : f32
      %148 = vector.broadcast %cst_60 : f32 to vector<1x128xf32>
      %149 = arith.select %147, %145, %148 : vector<1x128xi1>, vector<1x128xf32>
      %150 = vector.shape_cast %149 : vector<1x128xf32> to vector<1x1x128xf32>
      %cst_61 = arith.constant dense<0.000000e+00> : vector<1xf32>
      %151 = vector.multi_reduction <add>, %150, %cst_61 [1, 2] : vector<1x1x128xf32> to vector<1xf32>
      %152 = vector.shape_cast %151 : vector<1xf32> to vector<1x1x1xf32>
      %153 = vector.extract %152[0, 0, 0] : f32 from vector<1x1x1xf32>
      %cst_62 = arith.constant 4.000000e+00 : f32
      %154 = arith.divf %153, %cst_62 : f32
      %155 = arith.addf %61, %154 : f32
      %cst_63 = arith.constant 2.000000e-01 : f32
      %156 = arith.addf %155, %cst_63 : f32
      %cst_64 = arith.constant 0.000000e+00 : f32
      %157 = arith.maximumf %156, %cst_64 : f32
      %158 = vector.broadcast %157 : f32 to vector<1x1xf32>
      %c0_65 = arith.constant 0 : index
      %c0_66 = arith.constant 0 : index
      %159 = vector.load %arg5[%c0_65, %c0_66] : memref<1x1xf32, #tpu.memory_space<vmem>>, vector<1x1xf32>
      tpu.vector_store %arg5[%c0_65, %c0_66], %158 {strides = array<i32>} : memref<1x1xf32, #tpu.memory_space<vmem>>, vector<1x1xf32>,
    } else {
    }
    return
  }
  func.func @transform_0(%arg0: i32, %arg1: i32) -> (i32, i32) {
    %c0_i32 = arith.constant 0 : i32
    %c0_i32_0 = arith.constant 0 : i32
    return %arg0, %c0_i32 : i32, i32
  }
  func.func @transform_1(%arg0: i32, %arg1: i32) -> (i32, i32) {
    %c0_i32 = arith.constant 0 : i32
    %c0_i32_0 = arith.constant 0 : i32
    return %c0_i32, %arg1 : i32, i32
  }
  func.func @transform_2(%arg0: i32, %arg1: i32) -> (i32, i32) {
    %c0_i32 = arith.constant 0 : i32
    return %arg0, %arg1 : i32, i32
  }
  func.func @transform_3(%arg0: i32, %arg1: i32) -> (i32, i32) {
    %c0_i32 = arith.constant 0 : i32
    %c0_i32_0 = arith.constant 0 : i32
    %c0_i32_1 = arith.constant 0 : i32
    return %c0_i32, %c0_i32_0 : i32, i32
  }
}

</mosaic_0001>

<llo_original>
// kernel: tpu_custom_call.1
$region0: #{tpu_custom_call.1}
  #allocation0 [shape = 'u32[]', space=smem, size = 0x4, offset = 0x4, fixed_abs, tag = 'smem constant byte address 0x4 - core index']
  #allocation1 [shape = 'u32[144,128]{1,0:T(1,128)}', space=vmem, size = 0x12000, scoped, tag = 'internal scratch']
  #allocation2 [shape = 'f32[8,8]{1,0:T(8,128)}', space=vmem, size = 0x1000, scoped, tag = 'scratch operand']
  #allocation3 [shape = 'f32[8,8]{1,0:T(8,128)}', space=vmem, size = 0x1000, scoped, tag = 'scratch operand']
  #allocation4 [shape = 'f32[32,8]{1,0:T(8,128)}', space=vmem, size = 0x4000, scoped, tag = 'scratch operand']
  %s0 = inlined_call_operand.vmem [shape: f32[8,32], index: 0, kind: input, shape index: {}]
  %s1 = inlined_call_operand.vmem [shape: f32[32,8], index: 1, kind: input, shape index: {}]
  %s2 = inlined_call_operand.vmem [shape: f32[8,8], index: 2, kind: input, shape index: {}]
  %s3 = inlined_call_operand.hbm [shape: f32[1,1], index: 3, kind: output, shape index: {}]
  %s4 = sld [smem:[#allocation0]]
  $region30: #{tpu_custom_call.1} parent=0
    _
  %s6 = ssub.s32 1, %s4
  %s7 = scalar_select 0, %s6, %s4
  $region1: #{tpu_custom_call.1} parent=0
    #allocation5 [shape = 'u8[512]{0}', space=vmem, size = 0x400, scoped, tag = 'output window, operand 0, single buffered']
    #allocation6 [shape = 's32[1]{0}', space=sflag, size = 0x4, scoped, tag = 'scoped memory for tpu_custom_call.1']
    %8 = vsyncpa [#allocation6], 0
    // Predicated region
    $region2: #{tpu_custom_call.1} parent=1 // pred_check
      _
    $region3: #{tpu_custom_call.1} parent=1 // pred_check_branch
      %10 = sbr.rel (0) target = $region5
    $region4: #{tpu_custom_call.1} parent=1 // pred_region
      _
    $region5: #{tpu_custom_call.1} parent=1 // pred_fallthru
      _
    // Predicated region
    $region6: #{tpu_custom_call.1} parent=1 // pred_check
      _
    $region7: #{tpu_custom_call.1} parent=1 // pred_check_branch
      %12 = sbr.rel (0) target = $region9
    $region8: #{tpu_custom_call.1} parent=1 // pred_region
      _
    $region9: #{tpu_custom_call.1} parent=1 // pred_fallthru
      _
    // Predicated region
    $region10: #{tpu_custom_call.1} parent=1 // pred_check
      _
    $region11: #{tpu_custom_call.1} parent=1 // pred_check_branch
      %14 = sbr.rel (0) target = $region13
    $region12: #{tpu_custom_call.1} parent=1 // pred_region
      _
    $region13: #{tpu_custom_call.1} parent=1 // pred_fallthru
      _
    %p15 = scmp.eq.s32.totalorder 0, 0
    %p16 = scmp.eq.s32.totalorder 0, 0
    %p17 = pnand %p15, %p16
    %p18 = pneg %p17
    // Predicated region
    $region14: #{tpu_custom_call.1} parent=1 // pred_check
      _
    $region15: #{tpu_custom_call.1} parent=1 // pred_check_branch
      %20 = sbr.rel (%p17) target = $region17
    $region16: #{tpu_custom_call.1} parent=1 // pred_region
      %vm21 = vcmask 64512
      %22 = vst.msk [vmem:[#allocation2] sm:$0xff] %vm21, 0.0
      %23 = vst.msk [vmem:[#allocation3] sm:$0xff] %vm21, 0.0
      %24 = vst.msk [vmem:[#allocation4] sm:$0xff] %vm21, -inf
      %25 = vst.msk [vmem:[#allocation4 + $0x8] sm:$0xff] %vm21, -inf
      %26 = vst.msk [vmem:[#allocation4 + $0x10] sm:$0xff] %vm21, -inf
      %27 = vst.msk [vmem:[#allocation4 + $0x18] sm:$0xff] %vm21, -inf
    $region17: #{tpu_custom_call.1} parent=1 // pred_fallthru
      _
    %v28 = vld [vmem:[%s0] sm:$0xff]
    %v29 = vld [vmem:[%s1] sm:$0xff]
    %v30 = vld [vmem:[%s1 + $0x8] sm:$0xff]
    %v31 = vld [vmem:[%s1 + $0x10] sm:$0xff]
    %v32 = vld [vmem:[%s1 + $0x18] sm:$0xff]
    %vm33 = vcmask 261120
    %v35 = vsel %vm33, %v28, 0
    %37 = vmatprep.subr.mxu0 0.0
    %38 = vmatpush1.msra.mxu0 %v29
    %39 = vmatprep.subr.mxu0 0.0
    %40 = vmatpush1.msra.mxu0 %v30
    %41 = vmatprep.subr.mxu0 0.0
    %42 = vmatpush1.msra.mxu0 %v31
    %43 = vmatprep.subr.mxu0 0.0
    %44 = vmatpush1.msra.mxu0 %v32
    %45 = vmatprep.subr.mxu0 0.0
    %46 = vmatpush1.msra.mxu0 0.0
    %47 = vmatprep.subr.mxu0 0.0
    %48 = vmatpush1.msra.mxu0 0.0
    %49 = vmatprep.subr.mxu0 0.0
    %50 = vmatpush1.msra.mxu0 0.0
    %51 = vmatprep.subr.mxu0 0.0
    %52 = vmatpush1.msra.mxu0 0.0
    %53 = vmatprep.subr.mxu0 0.0
    %54 = vmatpush1.msra.mxu0 0.0
    %55 = vmatprep.subr.mxu0 0.0
    %56 = vmatpush1.msra.mxu0 0.0
    %57 = vmatprep.subr.mxu0 0.0
    %58 = vmatpush1.msra.mxu0 0.0
    %59 = vmatprep.subr.mxu0 0.0
    %60 = vmatpush1.msra.mxu0 0.0
    %61 = vmatprep.subr.mxu0 0.0
    %62 = vmatpush1.msra.mxu0 0.0
    %63 = vmatprep.subr.mxu0 0.0
    %64 = vmatpush1.msra.mxu0 0.0
    %65 = vmatprep.subr.mxu0 0.0
    %66 = vmatpush1.msra.mxu0 0.0
    %67 = vmatprep.subr.mxu0 0.0
    %68 = vmatpush1.msra.mxu0 0.0
    %69 = vmatprep.subr.mxu0 0.0
    %70 = vmatpush1.msra.mxu0 0.0
    %71 = vmatprep.subr.mxu0 0.0
    %72 = vmatpush1.msra.mxu0 0.0
    %73 = vmatprep.subr.mxu0 0.0
    %74 = vmatpush1.msra.mxu0 0.0
    %75 = vmatprep.subr.mxu0 0.0
    %76 = vmatpush1.msra.mxu0 0.0
    %77 = vmatprep.subr.mxu0 0.0
    %78 = vmatpush1.msra.mxu0 0.0
    %79 = vmatprep.subr.mxu0 0.0
    %80 = vmatpush1.msra.mxu0 0.0
    %81 = vmatprep.subr.mxu0 0.0
    %82 = vmatpush1.msra.mxu0 0.0
    %83 = vmatprep.subr.mxu0 0.0
    %84 = vmatpush1.msra.mxu0 0.0
    %85 = vmatprep.subr.mxu0 0.0
    %86 = vmatpush1.msra.mxu0 0.0
    %87 = vmatprep.subr.mxu0 0.0
    %88 = vmatpush1.msra.mxu0 0.0
    %89 = vmatprep.subr.mxu0 0.0
    %90 = vmatpush1.msra.mxu0 0.0
    %91 = vmatprep.subr.mxu0 0.0
    %92 = vmatpush1.msra.mxu0 0.0
    %93 = vmatprep.subr.mxu0 0.0
    %94 = vmatpush1.msra.mxu0 0.0
    %95 = vmatprep.subr.mxu0 0.0
    %96 = vmatpush1.msra.mxu0 0.0
    %97 = vmatprep.subr.mxu0 0.0
    %98 = vmatpush1.msra.mxu0 0.0
    %99 = vmatprep.subr.mxu0 0.0
    %100 = vmatpush1.msra.mxu0 0.0
    %101 = vmatprep.mubr.f32.mxu0 0.0
    %102 = vmatmul.mubr.f32.gmra.mrb[0].mxu0 %v35
    %v103 = vpop.f32.mrb[0].mxu0
    %v104 = vadd.f32 0.0, %v103
    %v105 = vpop.f32.mrb[0].mxu0
    %106 = vdwg.mxu0
    %v107 = vld [vmem:[%s2] sm:$0xff]
    %vm108 = vcmp.gt.f32.partialorder %v107, 0.7
    %vm109 = vcmp.lt.f32.partialorder %v107, 0.3
    %v110 = vld [vmem:[#allocation2] sm:$0xff]
    %v111 = vsel %vm108, %v104, 0.0
    %v112 = vadd.f32 %v110, %v111
    %vm113 = vcmask 64512
    %114 = vst.msk [vmem:[#allocation2] sm:$0xff] %vm113, %v112
    %v115 = vld [vmem:[#allocation3] sm:$0xff]
    %v116 = vsel %vm108, 1, 0
    %v117 = vcvt.s32.f32 %v116
    %v118 = vadd.f32 %v115, %v117
    %119 = vst.msk [vmem:[#allocation3] sm:$0xff] %vm113, %v118
    %v120 = vsel %vm109, %v104, -inf
    %v121 = vld [vmem:[#allocation4] sm:$0xff]
    %vm122 = vcmp.ge.f32.partialorder %v121, %v120
    %v123 = vsel %vm122, %v121, %v120
    %124 = vst.msk [vmem:[#allocation4] sm:$0xff] %vm113, %v123
    %v125 = vsel %vm122, %v120, %v121
    %v126 = vld [vmem:[#allocation4 + $0x8] sm:$0xff]
    %vm127 = vcmp.ge.f32.partialorder %v126, %v125
    %v128 = vsel %vm127, %v126, %v125
    %129 = vst.msk [vmem:[#allocation4 + $0x8] sm:$0xff] %vm113, %v128
    %v130 = vsel %vm127, %v125, %v126
    %v131 = vld [vmem:[#allocation4 + $0x10] sm:$0xff]
    %vm132 = vcmp.ge.f32.partialorder %v131, %v130
    %v133 = vsel %vm132, %v131, %v130
    %134 = vst.msk [vmem:[#allocation4 + $0x10] sm:$0xff] %vm113, %v133
    %v135 = vsel %vm132, %v130, %v131
    %v136 = vld [vmem:[#allocation4 + $0x18] sm:$0xff]
    %vm137 = vcmp.ge.f32.partialorder %v136, %v135
    %v138 = vsel %vm137, %v136, %v135
    %139 = vst.msk [vmem:[#allocation4 + $0x18] sm:$0xff] %vm113, %v138
    // Predicated region
    $region18: #{tpu_custom_call.1} parent=1 // pred_check
      _
    $region19: #{tpu_custom_call.1} parent=1 // pred_check_branch
      %141 = sbr.rel (%p17) target = $region21
    $region20: #{tpu_custom_call.1} parent=1 // pred_region
      %v142 = vld [vmem:[#allocation2] sm:$0xff]
      %v143 = vsel %vm113, %v142, 0.0
      %144 = vadd.xlane.f32.xlu0 %v143
      %v145 = vpop.xlane.xlu0 %144
      %v146 = vrot.slane %v145, 4
      %v147 = vadd.f32 %v145, %v146
      %v148 = vrot.slane %v147, 2
      %v149 = vadd.f32 %v147, %v148
      %v150 = vrot.slane %v149, 1
      %v151 = vadd.f32 %v149, %v150
      %s152 = vtos %v151
      %v153 = vld [vmem:[#allocation3] sm:$0xff]
      %v154 = vsel %vm113, %v153, 0.0
      %155 = vadd.xlane.f32.xlu0 %v154
      %v156 = vpop.xlane.xlu0 %155
      %v157 = vrot.slane %v156, 4
      %v158 = vadd.f32 %v156, %v157
      %v159 = vrot.slane %v158, 2
      %v160 = vadd.f32 %v158, %v159
      %v161 = vrot.slane %v160, 1
      %v162 = vadd.f32 %v160, %v161
      %s163 = vtos %v162
      %s164 = smul.f32 %s152, 2.0
      %s165 = ssub.f32 0.0, %s164
      %v166 = vstv %s163
      %v167 = vrcp.pop %v166
      %s168 = vtos %v167
      %s169 = smul.f32 %s165, %s168
      %v170 = vld [vmem:[#allocation4] sm:$0xff]
      %v171 = vld [vmem:[#allocation4 + $0x8] sm:$0xff]
      %v172 = vld [vmem:[#allocation4 + $0x10] sm:$0xff]
      %v173 = vld [vmem:[#allocation4 + $0x18] sm:$0xff]
      %v174 = vlaneseq
      %v175 = vshrl.u32 %v174, 7
      %v176 = vadd.s32 %v175, 8
      %v177 = vadd.s32 %v175, 16
      %v178 = vadd.s32 %v175, 24
      %v179 = vlaneseq
      %v180 = vand.u32 %v179, 127
      %v181 = vmul.u32 %v175, 8
      %v182 = vmul.u32 %v176, 8
      %v183 = vmul.u32 %v177, 8
      %v184 = vmul.u32 %v178, 8
      %v185 = vadd.s32 %v181, %v180
      %v186 = vadd.s32 %v182, %v180
      %v187 = vadd.s32 %v183, %v180
      %v188 = vadd.s32 %v184, %v180
      %v189 = vsel %vm113, %v170, -inf
      %v190 = vsel %vm113, %v171, -inf
      %v191 = vsel %vm113, %v172, -inf
      %v192 = vsel %vm113, %v173, -inf
      %v193 = vmax.f32 %v189, %v190
      %v194 = vmax.f32 %v191, %v192
      %v195 = vmax.f32 %v193, %v194
      %196 = vmax.xlane.f32.xlu0 %v195
      %v197 = vpop.xlane.xlu0 %196
      %v198 = vrot.slane %v197, 4
      %v199 = vmax.f32 %v197, %v198
      %v200 = vrot.slane %v199, 2
      %v201 = vmax.f32 %v199, %v200
      %v202 = vrot.slane %v201, 1
      %v203 = vmax.f32 %v201, %v202
      %s204 = vtos %v203
      %v205 = vstv %s204
      %vm206 = vcmp.eq.f32.partialorder %v170, %v205
      %vm207 = vcmp.eq.f32.partialorder %v171, %v205
      %vm208 = vcmp.eq.f32.partialorder %v172, %v205
      %vm209 = vcmp.eq.f32.partialorder %v173, %v205
      %v210 = vsel %vm206, %v185, 256
      %v211 = vsel %vm207, %v186, 256
      %v212 = vsel %vm208, %v187, 256
      %v213 = vsel %vm209, %v188, 256
      %v214 = vsel %vm113, %v210, 2147483647
      %v215 = vsel %vm113, %v211, 2147483647
      %v216 = vsel %vm113, %v212, 2147483647
      %v217 = vsel %vm113, %v213, 2147483647
      %vm218 = vcmp.lt.s32.totalorder %v214, %v215
      %v219 = vsel %vm218, %v214, %v215
      %vm220 = vcmp.lt.s32.totalorder %v216, %v217
      %v221 = vsel %vm220, %v216, %v217
      %vm222 = vcmp.lt.s32.totalorder %v219, %v221
      %v223 = vsel %vm222, %v219, %v221
      %v224 = vand.u32 %v223, 65535
      %v225 = vshra.s32 %v223, 16
      %v226 = vcvt.s32.f32 %v224
      %v227 = vcvt.s32.f32 %v225
      %228 = vmin.xlane.f32.xlu0 %v227
      %v229 = vpop.xlane.xlu0 %228
      %vm230 = vcmp.eq.f32.partialorder %v227, %v229
      %v231 = vsel %vm230, %v226, inf
      %232 = vmin.xlane.f32.xlu0 %v231
      %v233 = vpop.xlane.xlu0 %232
      %v234 = vcvt.f32.s32 %v233
      %v235 = vcvt.f32.s32 %v229
      %v236 = vshll.u32 %v235, 16
      %v237 = vadd.s32 %v236, %v234
      %v238 = vrot.slane %v237, 4
      %vm239 = vcmp.lt.s32.totalorder %v237, %v238
      %v240 = vsel %vm239, %v237, %v238
      %v241 = vrot.slane %v240, 2
      %vm242 = vcmp.lt.s32.totalorder %v240, %v241
      %v243 = vsel %vm242, %v240, %v241
      %v244 = vrot.slane %v243, 1
      %vm245 = vcmp.lt.s32.totalorder %v243, %v244
      %v246 = vsel %vm245, %v243, %v244
      %s247 = vtos %v246
      %v248 = vstv %s247
      %vm249 = vcmp.eq.s32.totalorder %v185, %v248
      %vm250 = vcmp.eq.s32.totalorder %v186, %v248
      %vm251 = vcmp.eq.s32.totalorder %v187, %v248
      %vm252 = vcmp.eq.s32.totalorder %v188, %v248
      %v253 = vsel %vm249, -inf, %v170
      %v254 = vsel %vm250, -inf, %v171
      %v255 = vsel %vm251, -inf, %v172
      %v256 = vsel %vm252, -inf, %v173
      %vm257 = vcmp.eq.s32.totalorder %v180, 0
      %v258 = vsel %vm257, %v205, -inf
      %v259 = vsel %vm113, %v253, -inf
      %v260 = vsel %vm113, %v254, -inf
      %v261 = vsel %vm113, %v255, -inf
      %v262 = vsel %vm113, %v256, -inf
      %v263 = vmax.f32 %v259, %v260
      %v264 = vmax.f32 %v261, %v262
      %v265 = vmax.f32 %v263, %v264
      %266 = vmax.xlane.f32.xlu0 %v265
      %v267 = vpop.xlane.xlu0 %266
      %v268 = vrot.slane %v267, 4
      %v269 = vmax.f32 %v267, %v268
      %v270 = vrot.slane %v269, 2
      %v271 = vmax.f32 %v269, %v270
      %v272 = vrot.slane %v271, 1
      %v273 = vmax.f32 %v271, %v272
      %s274 = vtos %v273
      %v275 = vstv %s274
      %vm276 = vcmp.eq.f32.partialorder %v253, %v275
      %vm277 = vcmp.eq.f32.partialorder %v254, %v275
      %vm278 = vcmp.eq.f32.partialorder %v255, %v275
      %vm279 = vcmp.eq.f32.partialorder %v256, %v275
      %v280 = vsel %vm276, %v185, 256
      %v281 = vsel %vm277, %v186, 256
      %v282 = vsel %vm278, %v187, 256
      %v283 = vsel %vm279, %v188, 256
      %v284 = vsel %vm113, %v280, 2147483647
      %v285 = vsel %vm113, %v281, 2147483647
      %v286 = vsel %vm113, %v282, 2147483647
      %v287 = vsel %vm113, %v283, 2147483647
      %vm288 = vcmp.lt.s32.totalorder %v284, %v285
      %v289 = vsel %vm288, %v284, %v285
      %vm290 = vcmp.lt.s32.totalorder %v286, %v287
      %v291 = vsel %vm290, %v286, %v287
      %vm292 = vcmp.lt.s32.totalorder %v289, %v291
      %v293 = vsel %vm292, %v289, %v291
      %v294 = vand.u32 %v293, 65535
      %v295 = vshra.s32 %v293, 16
      %v296 = vcvt.s32.f32 %v294
      %v297 = vcvt.s32.f32 %v295
      %298 = vmin.xlane.f32.xlu0 %v297
      %v299 = vpop.xlane.xlu0 %298
      %vm300 = vcmp.eq.f32.partialorder %v297, %v299
      %v301 = vsel %vm300, %v296, inf
      %302 = vmin.xlane.f32.xlu0 %v301
      %v303 = vpop.xlane.xlu0 %302
      %v304 = vcvt.f32.s32 %v303
      %v305 = vcvt.f32.s32 %v299
      %v306 = vshll.u32 %v305, 16
      %v307 = vadd.s32 %v306, %v304
      %v308 = vrot.slane %v307, 4
      %vm309 = vcmp.lt.s32.totalorder %v307, %v308
      %v310 = vsel %vm309, %v307, %v308
      %v311 = vrot.slane %v310, 2
      %vm312 = vcmp.lt.s32.totalorder %v310, %v311
      %v313 = vsel %vm312, %v310, %v311
      %v314 = vrot.slane %v313, 1
      %vm315 = vcmp.lt.s32.totalorder %v313, %v314
      %v316 = vsel %vm315, %v313, %v314
      %s317 = vtos %v316
      %v318 = vstv %s317
      %vm319 = vcmp.eq.s32.totalorder %v185, %v318
      %vm320 = vcmp.eq.s32.totalorder %v186, %v318
      %vm321 = vcmp.eq.s32.totalorder %v187, %v318
      %vm322 = vcmp.eq.s32.totalorder %v188, %v318
      %v323 = vsel %vm319, -inf, %v253
      %v324 = vsel %vm320, -inf, %v254
      %v325 = vsel %vm321, -inf, %v255
      %v326 = vsel %vm322, -inf, %v256
      %vm327 = vcmp.eq.s32.totalorder %v180, 1
      %v328 = vsel %vm327, %v275, %v258
      %v329 = vsel %vm113, %v323, -inf
      %v330 = vsel %vm113, %v324, -inf
      %v331 = vsel %vm113, %v325, -inf
      %v332 = vsel %vm113, %v326, -inf
      %v333 = vmax.f32 %v329, %v330
      %v334 = vmax.f32 %v331, %v332
      %v335 = vmax.f32 %v333, %v334
      %336 = vmax.xlane.f32.xlu0 %v335
      %v337 = vpop.xlane.xlu0 %336
      %v338 = vrot.slane %v337, 4
      %v339 = vmax.f32 %v337, %v338
      %v340 = vrot.slane %v339, 2
      %v341 = vmax.f32 %v339, %v340
      %v342 = vrot.slane %v341, 1
      %v343 = vmax.f32 %v341, %v342
      %s344 = vtos %v343
      %v345 = vstv %s344
      %vm346 = vcmp.eq.f32.partialorder %v323, %v345
      %vm347 = vcmp.eq.f32.partialorder %v324, %v345
      %vm348 = vcmp.eq.f32.partialorder %v325, %v345
      %vm349 = vcmp.eq.f32.partialorder %v326, %v345
      %v350 = vsel %vm346, %v185, 256
      %v351 = vsel %vm347, %v186, 256
      %v352 = vsel %vm348, %v187, 256
      %v353 = vsel %vm349, %v188, 256
      %v354 = vsel %vm113, %v350, 2147483647
      %v355 = vsel %vm113, %v351, 2147483647
      %v356 = vsel %vm113, %v352, 2147483647
      %v357 = vsel %vm113, %v353, 2147483647
      %vm358 = vcmp.lt.s32.totalorder %v354, %v355
      %v359 = vsel %vm358, %v354, %v355
      %vm360 = vcmp.lt.s32.totalorder %v356, %v357
      %v361 = vsel %vm360, %v356, %v357
      %vm362 = vcmp.lt.s32.totalorder %v359, %v361
      %v363 = vsel %vm362, %v359, %v361
      %v364 = vand.u32 %v363, 65535
      %v365 = vshra.s32 %v363, 16
      %v366 = vcvt.s32.f32 %v364
      %v367 = vcvt.s32.f32 %v365
      %368 = vmin.xlane.f32.xlu0 %v367
      %v369 = vpop.xlane.xlu0 %368
      %vm370 = vcmp.eq.f32.partialorder %v367, %v369
      %v371 = vsel %vm370, %v366, inf
      %372 = vmin.xlane.f32.xlu0 %v371
      %v373 = vpop.xlane.xlu0 %372
      %v374 = vcvt.f32.s32 %v373
      %v375 = vcvt.f32.s32 %v369
      %v376 = vshll.u32 %v375, 16
      %v377 = vadd.s32 %v376, %v374
      %v378 = vrot.slane %v377, 4
      %vm379 = vcmp.lt.s32.totalorder %v377, %v378
      %v380 = vsel %vm379, %v377, %v378
      %v381 = vrot.slane %v380, 2
      %vm382 = vcmp.lt.s32.totalorder %v380, %v381
      %v383 = vsel %vm382, %v380, %v381
      %v384 = vrot.slane %v383, 1
      %vm385 = vcmp.lt.s32.totalorder %v383, %v384
      %v386 = vsel %vm385, %v383, %v384
      %s387 = vtos %v386
      %v388 = vstv %s387
      %vm389 = vcmp.eq.s32.totalorder %v185, %v388
      %vm390 = vcmp.eq.s32.totalorder %v186, %v388
      %vm391 = vcmp.eq.s32.totalorder %v187, %v388
      %vm392 = vcmp.eq.s32.totalorder %v188, %v388
      %v393 = vsel %vm389, -inf, %v323
      %v394 = vsel %vm390, -inf, %v324
      %v395 = vsel %vm391, -inf, %v325
      %v396 = vsel %vm392, -inf, %v326
      %vm397 = vcmp.eq.s32.totalorder %v180, 2
      %v398 = vsel %vm397, %v345, %v328
      %v399 = vsel %vm113, %v393, -inf
      %v400 = vsel %vm113, %v394, -inf
      %v401 = vsel %vm113, %v395, -inf
      %v402 = vsel %vm113, %v396, -inf
      %v403 = vmax.f32 %v399, %v400
      %v404 = vmax.f32 %v401, %v402
      %v405 = vmax.f32 %v403, %v404
      %406 = vmax.xlane.f32.xlu0 %v405
      %v407 = vpop.xlane.xlu0 %406
      %v408 = vrot.slane %v407, 4
      %v409 = vmax.f32 %v407, %v408
      %v410 = vrot.slane %v409, 2
      %v411 = vmax.f32 %v409, %v410
      %v412 = vrot.slane %v411, 1
      %v413 = vmax.f32 %v411, %v412
      %s414 = vtos %v413
      %vm415 = vcmp.eq.s32.totalorder %v180, 3
      %v416 = vstv %s414
      %v417 = vsel %vm415, %v416, %v398
      %v418 = vmul.f32 %v417, 2.0
      %v419 = vmul.f32 %v418, 1.442695
      %v420 = vpow.pop %v419
      %v421 = vsub.f32 0.0, %v420
      %v422 = vadd.f32 %v421, 1.0
      %v423 = vlog2.pop %v422
      %v424 = vmul.f32 %v423, 0.6931472
      %v425 = vmul.f32 -0.5, %v421
      %v426 = vadd.f32 %v425, 1.0
      %v427 = vmul.f32 %v426, %v421
      %v428 = vand.u32 2147483647, %v421
      %vm429 = vcmp.lt.f32.partialorder %v428, 0.0004427343
      %v430 = vsel %vm429, %v427, %v424
      %v431 = vsub.f32 0.0, %v430
      %vm432 = vcmp.lt.s32.totalorder %v180, 4
      %v433 = vsel %vm432, %v431, 0.0
      %vm434 = vcmask 1040384
      %v435 = vsel %vm434, %v433, 0.0
      %436 = vadd.xlane.f32.xlu0 %v435
      %v437 = vpop.xlane.xlu0 %436
      %v438 = vrot.slane %v437, 4
      %v439 = vadd.f32 %v437, %v438
      %v440 = vrot.slane %v439, 2
      %v441 = vadd.f32 %v439, %v440
      %v442 = vrot.slane %v441, 1
      %v443 = vadd.f32 %v441, %v442
      %s444 = vtos %v443
      %v445 = vrcp.pop 4.0
      %s446 = vtos %v445
      %s447 = smul.f32 %s444, %s446
      %s448 = sadd.f32 %s169, %s447
      %s449 = sadd.f32 %s448, 0.2
      %s450 = smax.f32 %s449, 0.0
      %v451 = vstv %s450
      %vm452 = vcmask 0
      %453 = vst.msk [vmem:[#allocation5] sm:$0x1] %vm452, %v451
    $region21: #{tpu_custom_call.1} parent=1 // pred_fallthru
      _
    // Predicated region
    $region22: #{tpu_custom_call.1} parent=1 // pred_check
      _
    $region23: #{tpu_custom_call.1} parent=1 // pred_check_branch
      %455 = sbr.rel (0) target = $region25
    $region24: #{tpu_custom_call.1} parent=1 // pred_region
      %s457 = ssub.s32 16, 16
      %458 = vsyncadd [#allocation6], %s457
      %s460 = sshll.u32 [#allocation5], 4
      %s461 = int_to_ptr.vmem [resolvable:$true] %s460
      %463 = dma.vmem_to_hbm [thread:$0]  %s461, 16, %s3, [#allocation6]
    $region25: #{tpu_custom_call.1} parent=1 // pred_fallthru
      _
    // Predicated region
    $region26: #{tpu_custom_call.1} parent=1 // pred_check
      _
    $region27: #{tpu_custom_call.1} parent=1 // pred_check_branch
      %465 = sbr.rel (0) target = $region29
    $region28: #{tpu_custom_call.1} parent=1 // pred_region
      %466 = dma.done [#allocation6], 16
    $region29: #{tpu_custom_call.1} parent=1 // pred_fallthru
      _
    %467 = vsyncpa [#allocation6], 1

</llo_original>
